<compile_context>
chip_gen: v6e
topology: v6e:2x2x1
jax: 0.10.0
libtpu: 0.0.40
codegen_flags: <defaults>
</compile_context>

<pallas_src>
import functools

import jax
import jax.numpy as jnp
from jax.experimental import pallas as pl
from jax.experimental.pallas import tpu as pltpu


# ----------------------------------------------------------------------------
# Small helpers
# ----------------------------------------------------------------------------
def _cdiv(a, b):
    return -(-a // b)


def _round_down(a, b):
    return (a // b) * b


def _vmem_capacity_bytes():
    # Generation-aware VMEM capacity (v5e/v6e: 128 MiB, v7x: 64 MiB).
    try:
        return int(pltpu.get_tpu_info().vmem_capacity_bytes)
    except Exception:
        return 64 * 1024 * 1024  # conservative fallback (v7x physical VMEM)


def _num_tensorcores():
    # Routing hint only (v7x has 2 TCs/chip); safe fallback = 1.
    try:
        info = pltpu.get_tpu_info()
        for attr in ("num_cores", "tensorcore_count", "num_tensorcores",
                     "cores_per_chip"):
            v = getattr(info, attr, None)
            if v:
                return int(v)
    except Exception:
        pass
    try:
        v = getattr(jax.devices()[0], "num_cores", None)
        if v:
            return int(v)
    except Exception:
        pass
    return 1


# ----------------------------------------------------------------------------
# In-kernel building blocks
# ----------------------------------------------------------------------------
def _accum_lane_partials(x_ref, n_valid):
    """VALU-accumulate lanes [0, n_valid) of the current (1, C, W) block into
    (C, 128) f32 sum / max lane-partials.  No cross-lane (XLU) reduce here.

    `n_valid` is a static Python int.  If n_valid is not a multiple of 128 the
    final chunk is read at full 128-lane width (the block width is a multiple
    of 128 in that case, so the read stays inside the block buffer) and the
    undefined tail lanes are masked with 0 / -inf.
    """
    C = x_ref.shape[1]
    n_full = n_valid // 128
    tail = n_valid - n_full * 128
    s_acc = None
    m_acc = None
    for k in range(n_full):
        c = x_ref[0, :, k * 128:(k + 1) * 128].astype(jnp.float32)
        if s_acc is None:
            s_acc, m_acc = c, c
        else:
            s_acc = s_acc + c
            m_acc = jnp.maximum(m_acc, c)
    if tail:
        c = x_ref[0, :, n_full * 128:(n_full + 1) * 128].astype(jnp.float32)
        lane = jax.lax.broadcasted_iota(jnp.int32, (C, 128), 1)
        valid = lane < tail
        cs = jnp.where(valid, c, 0.0)
        cm = jnp.where(valid, c, -jnp.inf)
        if s_acc is None:
            s_acc, m_acc = cs, cm
        else:
            s_acc = s_acc + cs
            m_acc = jnp.maximum(m_acc, cm)
    return s_acc, m_acc


def _mlp_sigmoid(avg_col, max_col, w1_ref, w2_ref):
    """sigmoid(MLP(avg) + MLP(max)) for (C, 1) pooled columns, all in f32.

    Second Linear is bias-free, so MLP(avg)+MLP(max) == w2 @ (relu(w1@avg) +
    relu(w1@max)) and the second layer is a single tiny matmul.
    """
    w1 = w1_ref[...].astype(jnp.float32)                                # (Ch, C)
    w2 = w2_ref[...].astype(jnp.float32)                                # (C, Ch)
    h = (jnp.maximum(jnp.dot(w1, avg_col, preferred_element_type=jnp.float32), 0.0)
         + jnp.maximum(jnp.dot(w1, max_col, preferred_element_type=jnp.float32), 0.0))
    z = jnp.dot(w2, h, preferred_element_type=jnp.float32)              # (C, 1)
    return jax.nn.sigmoid(z)


# ----------------------------------------------------------------------------
# Resident (single-pass) kernel: whole (C, S) slab per batch element in VMEM.
# 1 HBM read + 1 HBM write; reduce + MLP + scale fused.
# ----------------------------------------------------------------------------
def _resident_kernel(x_ref, w1_ref, w2_ref, o_ref, *, s_true):
    n_full = s_true // 128
    rem = s_true - n_full * 128

    sum_col = None
    max_col = None
    if n_full:
        s_acc, m_acc = _accum_lane_partials(x_ref, n_full * 128)
        sum_col = jnp.sum(s_acc, axis=-1, keepdims=True)                # (C, 1)
        max_col = jnp.max(m_acc, axis=-1, keepdims=True)
    if rem:
        # Exact-width tail slice (block width == S here, no padding exists).
        t = x_ref[0, :, n_full * 128:s_true].astype(jnp.float32)        # (C, rem)
        t_sum = jnp.sum(t, axis=-1, keepdims=True)
        t_max = jnp.max(t, axis=-1, keepdims=True)
        sum_col = t_sum if sum_col is None else sum_col + t_sum
        max_col = t_max if max_col is None else jnp.maximum(max_col, t_max)

    avg_col = sum_col * (1.0 / s_true)
    att = _mlp_sigmoid(avg_col, max_col, w1_ref, w2_ref)                # (C, 1) f32

    # Scale in the I/O dtype (bf16-native on v6e/v7x; no full f32 temporaries).
    o_ref[0] = x_ref[0] * att.astype(o_ref.dtype)


def _resident_path(x3, w1, w2, capacity):
    B, C, S = x3.shape
    itemsize = jnp.dtype(x3.dtype).itemsize
    w_bytes = (w1.size * jnp.dtype(w1.dtype).itemsize
               + w2.size * jnp.dtype(w2.dtype).itemsize)
    need = 5 * C * S * itemsize + 2 * w_bytes + 2 * C * 128 * 4 + (2 << 20)
    vmem_limit = int(min(capacity * 3 // 4, max(need + (4 << 20), 32 << 20)))
    return pl.pallas_call(
        functools.partial(_resident_kernel, s_true=S),
        out_shape=jax.ShapeDtypeStruct((B, C, S), x3.dtype),
        grid=(B,),
        in_specs=[
            pl.BlockSpec((1, C, S), lambda b: (b, 0, 0)),   # full-dim block: no pad
            pl.BlockSpec(w1.shape, lambda b: (0, 0)),       # weights resident
            pl.BlockSpec(w2.shape, lambda b: (0, 0)),
        ],
        out_specs=pl.BlockSpec((1, C, S), lambda b: (b, 0, 0)),
        compiler_params=pltpu.CompilerParams(
            dimension_semantics=("parallel",),
            vmem_limit_bytes=vmem_limit,
        ),
    )(x3, w1, w2)


# ----------------------------------------------------------------------------
# Tiled 2-phase path:
#   Phase A: per-tile (C, 128) VALU sum/max lane-partials (grid fully parallel).
#   XLA    : combine partials + tiny MLP + sigmoid -> att (B, C, 1) f32.
#   Phase B: stream x again, scale by att with lane-dense tiles.
# ----------------------------------------------------------------------------
def _pool_partials_kernel(x_ref, sum_ref, max_ref, *, s_true, tile_s):
    n_s = _cdiv(s_true, tile_s)
    rem = s_true - (n_s - 1) * tile_s          # valid lanes in the last tile

    def emit(n_valid):
        s_acc, m_acc = _accum_lane_partials(x_ref, n_valid)
        sum_ref[0, 0] = s_acc
        max_ref[0, 0] = m_acc

    if rem == tile_s:                          # S divisible by tile_s: no masking
        emit(tile_s)
    else:
        is_last = pl.program_id(1) == n_s - 1

        @pl.when(jnp.logical_not(is_last))
        def _():
            emit(tile_s)

        @pl.when(is_last)                      # mask work only on the ragged tile
        def _():
            emit(rem)


def _scale_kernel(x_ref, att_ref, o_ref):
    # att is (C, 1) f32; scale in the I/O dtype (bf16-native on v6e/v7x).
    o_ref[0] = x_ref[0] * att_ref[0].astype(o_ref.dtype)


def _choose_tiles(S, C, itemsize, capacity, tile_s, tile_b):
    # Requires S >= 128 (smaller shapes always route to the resident path).
    s_cap = _round_down(S, 128)                # keep blocks <= array dim
    # Phase A: input tile double-buffered; partial outputs are tiny.
    if tile_s is None:
        budget_a = min(capacity // 4, 32 << 20)
        by_vmem = budget_a // max(2 * C * itemsize, 1)
        by_unroll = (1 << 20) // max(C, 1)     # bound unrolled 128-lane chunks
        tile_s = min(by_vmem, by_unroll, s_cap)
    tile_s = max(128, min(_round_down(int(tile_s), 128), s_cap))
    # Phase B: input + output tiles, both double-buffered (capacity//4 budget:
    # ~32 MiB on v5e/v6e, ~16 MiB on v7x).
    if tile_b is None:
        tile_b = (capacity // 4) // max(4 * C * itemsize, 1)
    tile_b = max(128, min(_round_down(int(tile_b), 128), s_cap))
    return tile_s, tile_b


def _tiled_path(x3, w1, w2, capacity, tile_s, tile_b):
    B, C, S = x3.shape
    itemsize = jnp.dtype(x3.dtype).itemsize
    tile_s, tile_b = _choose_tiles(S, C, itemsize, capacity, tile_s, tile_b)
    n_a = _cdiv(S, tile_s)
    n_b = _cdiv(S, tile_b)

    # ---- Phase A: per-tile lane-partials; both grid axes parallel so megacore
    # can shard over S even at B == 1 (v7x).
    need_a = 2 * C * tile_s * itemsize + 4 * C * 128 * 4 + (2 << 20)
    vmem_a = int(min(capacity * 3 // 4, max(need_a + (8 << 20), 32 << 20)))
    sum_part, max_part = pl.pallas_call(
        functools.partial(_pool_partials_kernel, s_true=S, tile_s=tile_s),
        out_shape=(jax.ShapeDtypeStruct((B, n_a, C, 128), jnp.float32),
                   jax.ShapeDtypeStruct((B, n_a, C, 128), jnp.float32)),
        grid=(B, n_a),
        in_specs=[pl.BlockSpec((1, C, tile_s), lambda b, s: (b, 0, s))],
        out_specs=(pl.BlockSpec((1, 1, C, 128), lambda b, s: (b, s, 0, 0)),
                   pl.BlockSpec((1, 1, C, 128), lambda b, s: (b, s, 0, 0))),
        compiler_params=pltpu.CompilerParams(
            dimension_semantics=("parallel", "parallel"),
            vmem_limit_bytes=vmem_a,
        ),
    )(x3)

    # ---- Combine partials + tiny MLP + sigmoid in plain XLA (O(B*C^2/r)).
    sum_col = jnp.sum(sum_part, axis=(1, 3))                 # (B, C) f32
    max_col = jnp.max(max_part, axis=(1, 3))                 # (B, C) f32
    avg_col = sum_col * (1.0 / S)
    w1f = w1.astype(jnp.float32)
    w2f = w2.astype(jnp.float32)

    def mlp(v):
        return jnp.maximum(v @ w1f.T, 0.0) @ w2f.T

    att = jax.nn.sigmoid(mlp(avg_col) + mlp(max_col))        # (B, C) f32
    att3 = att[:, :, None]                                   # (B, C, 1)

    # ---- Phase B: stream x once more and scale (lane-dense tiles, no pad/slice;
    # Pallas drops OOB lanes of the last partial output block).
    need_b = 4 * C * tile_b * itemsize + 2 * C * 4 + (2 << 20)
    vmem_b = int(min(capacity * 3 // 4, max(need_b + (8 << 20), 32 << 20)))
    out = pl.pallas_call(
        _scale_kernel,
        out_shape=jax.ShapeDtypeStruct((B, C, S), x3.dtype),
        grid=(B, n_b),
        in_specs=[pl.BlockSpec((1, C, tile_b), lambda b, s: (b, 0, s)),
                  pl.BlockSpec((1, C, 1), lambda b, s: (b, 0, 0))],
        out_specs=pl.BlockSpec((1, C, tile_b), lambda b, s: (b, 0, s)),
        compiler_params=pltpu.CompilerParams(
            dimension_semantics=("parallel", "parallel"),
            vmem_limit_bytes=vmem_b,
        ),
    )(x3, att3)
    return out


# ----------------------------------------------------------------------------
# Public wrapper
# ----------------------------------------------------------------------------
def channel_attention(x, w1, w2, *, max_resident_bytes=None, tile_s=None,
                      tile_b=None):
    """ChannelAttention forward.

    x : (B, C, D, H, W)  (f32 or bf16)
    w1: (C // r, C)      torch Linear(C, C//r, bias=False).weight
    w2: (C, C // r)      torch Linear(C//r, C, bias=False).weight
    """
    B, C, D, H, W = x.shape
    S = D * H * W
    x3 = x.reshape(B, C, S)                                   # free reshape

    itemsize = jnp.dtype(x.dtype).itemsize
    w_bytes = (w1.size * jnp.dtype(w1.dtype).itemsize
               + w2.size * jnp.dtype(w2.dtype).itemsize)
    capacity = _vmem_capacity_bytes()
    if max_resident_bytes is None:
        max_resident_bytes = capacity // 2

    # In-kernel temporaries are chunked (no full f32 slab), so this is an
    # honest VMEM estimate for the resident kernel (in/out double-buffered
    # + 1x slack + weights + accumulators).
    resident_need = (5 * C * S * itemsize + 2 * w_bytes
                     + 2 * C * 128 * 4 + (2 << 20))
    use_resident = (
        S < 128                                  # too small to lane-tile; tiny
        or (tile_s is None and tile_b is None
            and resident_need <= max_resident_bytes
            and B >= _num_tensorcores())         # v7x: keep both TCs busy at B=1
    )
    if use_resident:
        out = _resident_path(x3, w1, w2, capacity)
    else:
        out = _tiled_path(x3, w1, w2, capacity, tile_s, tile_b)
    return out.reshape(x.shape)


def _reference(x, w1, w2):
    # Pure-JAX reference matching the PyTorch forward.
    B, C = x.shape[:2]
    xf = x.astype(jnp.float32).reshape(B, C, -1)
    avg = jnp.mean(xf, axis=-1)                        # (B, C)
    mx = jnp.max(xf, axis=-1)                          # (B, C)

    def mlp(v):
        h = jnp.maximum(v @ w1.T.astype(jnp.float32), 0.0)
        return h @ w2.T.astype(jnp.float32)

    att = jax.nn.sigmoid(mlp(avg) + mlp(mx))           # (B, C)
    return (x.astype(jnp.float32) * att[:, :, None, None, None]).astype(x.dtype)


if __name__ == "__main__":
    key = jax.random.PRNGKey(0)
    kx, k1, k2, kx2, k3, k4 = jax.random.split(key, 6)

    # --- Test 1: small shape, resident single-pass path (S = 4*4*8 = 128). ---
    B, C, D, H, W = 2, 32, 4, 4, 8
    reduction_ratio = 16
    Ch = C // reduction_ratio                          # hidden = 2

    x = jax.random.normal(kx, (B, C, D, H, W), dtype=jnp.float32)
    w1 = jax.random.normal(k1, (Ch, C), dtype=jnp.float32) * 0.1
    w2 = jax.random.normal(k2, (C, Ch), dtype=jnp.float32) * 0.1

    out = jax.block_until_ready(channel_attention(x, w1, w2))
    ref = _reference(x, w1, w2)
    assert out.shape == x.shape
    assert jnp.allclose(out, ref, atol=1e-5, rtol=1e-5), "resident path mismatch"

    # --- Test 2: force the tiled 2-phase path with a ragged spatial size
    #     (S = 4*5*20 = 400 -> 4 tiles of 128, 16-lane masked tail in Phase A,
    #     masked last output block in Phase B).  x shifted negative so an
    #     unmasked garbage/zero tail would corrupt the max pool. ---
    B2, C2, D2, H2, W2 = 2, 16, 4, 5, 20
    Ch2 = C2 // 4
    x2 = jax.random.normal(kx2, (B2, C2, D2, H2, W2), dtype=jnp.float32) - 3.0
    w1b = jax.random.normal(k3, (Ch2, C2), dtype=jnp.float32) * 0.1
    w2b = jax.random.normal(k4, (C2, Ch2), dtype=jnp.float32) * 0.1

    out2 = jax.block_until_ready(
        channel_attention(x2, w1b, w2b, max_resident_bytes=0, tile_s=128))
    ref2 = _reference(x2, w1b, w2b)
    assert out2.shape == x2.shape
    assert jnp.allclose(out2, ref2, atol=1e-5, rtol=1e-5), "tiled path mismatch"

    print("KERNEL_OK")
</pallas_src>

<mosaic_0001>
module attributes {stable_mosaic.version = 11 : i64} {
  func.func @_resident_kernel(%arg0: i32, %arg1: memref<1x32x128xf32, #tpu.memory_space<vmem>>, %arg2: memref<2x32xf32, #tpu.memory_space<vmem>>, %arg3: memref<32x2xf32, #tpu.memory_space<vmem>>, %arg4: memref<1x32x128xf32, #tpu.memory_space<vmem>>) attributes {dimension_semantics = [#tpu.dimension_semantics<parallel>], iteration_bounds = array<i64: 2>, scalar_prefetch = 0 : i64, scratch_operands = 0 : i64, tpu.core_type = #tpu.core_type<tc>, window_params = [{transform_indices = @transform_0, window_bounds = array<i64: 1, 32, 128>}, {pipeline_mode = #tpu.pipeline_mode<synchronous>, transform_indices = @transform_1, window_bounds = array<i64: 2, 32>}, {pipeline_mode = #tpu.pipeline_mode<synchronous>, transform_indices = @transform_2, window_bounds = array<i64: 32, 2>}, {transform_indices = @transform_3, window_bounds = array<i64: 1, 32, 128>}]} {
    %c0 = arith.constant 0 : index
    %c0_0 = arith.constant 0 : index
    %c0_1 = arith.constant 0 : index
    %0 = vector.load %arg1[%c0, %c0_0, %c0_1] : memref<1x32x128xf32, #tpu.memory_space<vmem>>, vector<1x32x128xf32>
    %1 = vector.shape_cast %0 : vector<1x32x128xf32> to vector<32x128xf32>
    %cst = arith.constant dense<0.000000e+00> : vector<32xf32>
    %2 = vector.multi_reduction <add>, %1, %cst [1] : vector<32x128xf32> to vector<32xf32>
    %3 = vector.shape_cast %2 : vector<32xf32> to vector<32x1xf32>
    %cst_2 = arith.constant dense<0xFF800000> : vector<32xf32>
    %4 = vector.multi_reduction <maximumf>, %1, %cst_2 [1] : vector<32x128xf32> to vector<32xf32>
    %5 = vector.shape_cast %4 : vector<32xf32> to vector<32x1xf32>
    %cst_3 = arith.constant 7.812500e-03 : f32
    %6 = vector.broadcast %cst_3 : f32 to vector<32x1xf32>
    %7 = arith.mulf %3, %6 : vector<32x1xf32>
    %c0_4 = arith.constant 0 : index
    %c0_5 = arith.constant 0 : index
    %8 = vector.load %arg2[%c0_4, %c0_5] : memref<2x32xf32, #tpu.memory_space<vmem>>, vector<2x32xf32>
    %c0_6 = arith.constant 0 : index
    %c0_7 = arith.constant 0 : index
    %9 = vector.load %arg3[%c0_6, %c0_7] : memref<32x2xf32, #tpu.memory_space<vmem>>, vector<32x2xf32>
    %cst_8 = arith.constant dense<0.000000e+00> : vector<2x1xf32>
    %10 = tpu.matmul %8, %7, %cst_8 {dimension_numbers = #tpu.dot_dimension_numbers<[1], [0], [0], [1], [0, 0, 1, 1], [], []>} : vector<2x32xf32>, vector<32x1xf32>, vector<2x1xf32> -> vector<2x1xf32>
    %cst_9 = arith.constant 0.000000e+00 : f32
    %11 = vector.broadcast %cst_9 : f32 to vector<2x1xf32>
    %12 = arith.maximumf %10, %11 : vector<2x1xf32>
    %cst_10 = arith.constant dense<0.000000e+00> : vector<2x1xf32>
    %13 = tpu.matmul %8, %5, %cst_10 {dimension_numbers = #tpu.dot_dimension_numbers<[1], [0], [0], [1], [0, 0, 1, 1], [], []>} : vector<2x32xf32>, vector<32x1xf32>, vector<2x1xf32> -> vector<2x1xf32>
    %cst_11 = arith.constant 0.000000e+00 : f32
    %14 = vector.broadcast %cst_11 : f32 to vector<2x1xf32>
    %15 = arith.maximumf %13, %14 : vector<2x1xf32>
    %16 = arith.addf %12, %15 : vector<2x1xf32>
    %cst_12 = arith.constant dense<0.000000e+00> : vector<32x1xf32>
    %17 = tpu.matmul %9, %16, %cst_12 {dimension_numbers = #tpu.dot_dimension_numbers<[1], [0], [0], [1], [0, 0, 1, 1], [], []>} : vector<32x2xf32>, vector<2x1xf32>, vector<32x1xf32> -> vector<32x1xf32>
    %18 = arith.negf %17 : vector<32x1xf32>
    %19 = math.exp %18 : vector<32x1xf32>
    %cst_13 = arith.constant 1.000000e+00 : f32
    %20 = vector.broadcast %cst_13 : f32 to vector<32x1xf32>
    %21 = arith.addf %20, %19 : vector<32x1xf32>
    %22 = arith.divf %20, %21 : vector<32x1xf32>
    %c0_14 = arith.constant 0 : index
    %c0_15 = arith.constant 0 : index
    %c0_16 = arith.constant 0 : index
    %23 = vector.load %arg1[%c0_14, %c0_15, %c0_16] : memref<1x32x128xf32, #tpu.memory_space<vmem>>, vector<1x32x128xf32>
    %24 = vector.shape_cast %23 : vector<1x32x128xf32> to vector<32x128xf32>
    %25 = vector.broadcast %22 : vector<32x1xf32> to vector<32x128xf32>
    %26 = arith.mulf %24, %25 : vector<32x128xf32>
    %c0_17 = arith.constant 0 : index
    %c0_18 = arith.constant 0 : index
    %c0_19 = arith.constant 0 : index
    %27 = vector.load %arg4[%c0_17, %c0_18, %c0_19] : memref<1x32x128xf32, #tpu.memory_space<vmem>>, vector<1x32x128xf32>
    %28 = vector.shape_cast %27 : vector<1x32x128xf32> to vector<32x128xf32>
    %29 = vector.shape_cast %26 : vector<32x128xf32> to vector<1x32x128xf32>
    tpu.vector_store %arg4[%c0_17, %c0_18, %c0_19], %29 {strides = array<i32>} : memref<1x32x128xf32, #tpu.memory_space<vmem>>, vector<1x32x128xf32>,
    return
  }
  func.func @transform_0(%arg0: i32) -> (i32, i32, i32) {
    %c0_i32 = arith.constant 0 : i32
    %c0_i32_0 = arith.constant 0 : i32
    %c0_i32_1 = arith.constant 0 : i32
    return %arg0, %c0_i32, %c0_i32_0 : i32, i32, i32
  }
  func.func @transform_1(%arg0: i32) -> (i32, i32) {
    %c0_i32 = arith.constant 0 : i32
    %c0_i32_0 = arith.constant 0 : i32
    %c0_i32_1 = arith.constant 0 : i32
    return %c0_i32, %c0_i32_0 : i32, i32
  }
  func.func @transform_2(%arg0: i32) -> (i32, i32) {
    %c0_i32 = arith.constant 0 : i32
    %c0_i32_0 = arith.constant 0 : i32
    %c0_i32_1 = arith.constant 0 : i32
    return %c0_i32, %c0_i32_0 : i32, i32
  }
  func.func @transform_3(%arg0: i32) -> (i32, i32, i32) {
    %c0_i32 = arith.constant 0 : i32
    %c0_i32_0 = arith.constant 0 : i32
    %c0_i32_1 = arith.constant 0 : i32
    return %arg0, %c0_i32, %c0_i32_0 : i32, i32, i32
  }
}

</mosaic_0001>

<llo_original>
// kernel: tpu_custom_call.1
$region0: #{tpu_custom_call.1}
  #allocation0 [shape = 'u32[]', space=smem, size = 0x4, offset = 0x4, fixed_abs, tag = 'smem constant byte address 0x4 - core index']
  #allocation1 [shape = 'u32[144,128]{1,0:T(1,128)}', space=vmem, size = 0x12000, scoped, tag = 'internal scratch']
  %s0 = inlined_call_operand.hbm [shape: f32[2,32,128], index: 0, kind: input, shape index: {}]
  %s1 = inlined_call_operand.vmem [shape: f32[2,32], index: 1, kind: input, shape index: {}]
  %s2 = inlined_call_operand.vmem [shape: f32[32,2], index: 2, kind: input, shape index: {}]
  %s3 = inlined_call_operand.hbm [shape: f32[2,32,128], index: 3, kind: output, shape index: {}]
  %s4 = sld [smem:[#allocation0]]
  $region49: #{tpu_custom_call.1} parent=0
    _
  %s6 = ssub.s32 1, %s4
  %s7 = scalar_select 0, %s6, %s4
  $region1: #{tpu_custom_call.1} parent=0
    #allocation2 [shape = 'u8[32768]{0}', space=vmem, size = 0x8000, scoped, tag = 'input window, operand 0']
    #allocation3 [shape = 's32[2]{0}', space=sflag, size = 0x8, scoped, tag = 'scoped memory for tpu_custom_call.1']
    #allocation4 [shape = 's32[2]{0}', space=sflag, size = 0x8, scoped, tag = 'scoped memory for tpu_custom_call.1']
    #allocation5 [shape = 'u8[32768]{0}', space=vmem, size = 0x8000, scoped, tag = 'output window, operand 0']
    %8 = vsyncpa [#allocation3], 0
    %s9 = scalar_lea.sflag [#allocation3], 1
    %10 = vsyncpa %s9, 0
    %11 = vsyncpa [#allocation4], 0
    %s12 = scalar_lea.sflag [#allocation4], 1
    %13 = vsyncpa %s12, 0
    loop: start=0, step=1, limit=4
    $region2: #{tpu_custom_call.1} parent=1 // loop_pre_header
      _
    $region3: #{tpu_custom_call.1} parent=1 // loop_header
      %s15 = sphi 0, %s19
      %p16 = scmp.ge.s32.totalorder %s15, 4
      %s25 = sphi 0, %s27
      %s28 = sphi 0, %s25
      %s29 = sphi 0, %s28
      %s45 = sphi 0, %s29
      %s49 = sphi 0, %s49
      %s51 = sphi 0, %s49
      %s52 = sphi 0, %s51
      %s66 = sphi 0, %s52
      %s70 = sphi 0, %s70
      %s72 = sphi 0, %s70
      %s73 = sphi 0, %s72
      %s87 = sphi 0, %s73
      %s93 = sphi 0, %s95
      %s96 = sphi 0, %s93
      %s97 = sphi 0, %s96
      %s113 = sphi 0, %s97
    $region4: #{tpu_custom_call.1} parent=1 // loop_header_branch
      %18 = sbr.rel (%p16) target = $region8
    $region5: #{tpu_custom_call.1} parent=1 // loop_body
      %s20 = ssub.s32 %s15, 1
      %s21 = ssub.s32 %s15, 2
      %s22 = sadd.s32 %s15, 1
      %s23 = ssub.s32 %s15, %s22
      %p24 = scmp.eq.s32.totalorder %s23, 0
      %s26 = sadd.s32 %s25, 1
      %s27 = scalar_select %p24, %s25, %s26
      %p30 = pneg %p24
      %p31 = scmp.eq.s32.totalorder %s15, 1
      %p32 = por %p30, %p31
      %p33 = scmp.ne.s32.totalorder %s25, %s28
      %p34 = scmp.eq.s32.totalorder %s15, 0
      %p35 = por %p33, %p34
      %p36 = scmp.ne.s32.totalorder %s25, %s28
      %p37 = scmp.eq.s32.totalorder %s20, 1
      %p38 = por %p36, %p37
      %p39 = scmp.ne.s32.totalorder %s28, %s29
      %p40 = scmp.eq.s32.totalorder %s20, 0
      %p41 = por %p39, %p40
      %p42 = scmp.ne.s32.totalorder %s28, %s29
      %p43 = scmp.eq.s32.totalorder %s21, 1
      %p44 = por %p42, %p43
      %p46 = scmp.ne.s32.totalorder %s29, %s45
      %p47 = scmp.eq.s32.totalorder %s21, 0
      %p48 = por %p46, %p47
      %s50 = sadd.s32 %s49, 1
      %p53 = scmp.eq.s32.totalorder %s15, 1
      %p54 = scmp.ne.s32.totalorder %s49, %s51
      %p55 = scmp.eq.s32.totalorder %s15, 0
      %p56 = por %p54, %p55
      %p57 = scmp.ne.s32.totalorder %s49, %s51
      %p58 = scmp.eq.s32.totalorder %s20, 1
      %p59 = por %p57, %p58
      %p60 = scmp.ne.s32.totalorder %s51, %s52
      %p61 = scmp.eq.s32.totalorder %s20, 0
      %p62 = por %p60, %p61
      %p63 = scmp.ne.s32.totalorder %s51, %s52
      %p64 = scmp.eq.s32.totalorder %s21, 1
      %p65 = por %p63, %p64
      %p67 = scmp.ne.s32.totalorder %s52, %s66
      %p68 = scmp.eq.s32.totalorder %s21, 0
      %p69 = por %p67, %p68
      %s71 = sadd.s32 %s70, 1
      %p74 = scmp.eq.s32.totalorder %s15, 1
      %p75 = scmp.ne.s32.totalorder %s70, %s72
      %p76 = scmp.eq.s32.totalorder %s15, 0
      %p77 = por %p75, %p76
      %p78 = scmp.ne.s32.totalorder %s70, %s72
      %p79 = scmp.eq.s32.totalorder %s20, 1
      %p80 = por %p78, %p79
      %p81 = scmp.ne.s32.totalorder %s72, %s73
      %p82 = scmp.eq.s32.totalorder %s20, 0
      %p83 = por %p81, %p82
      %p84 = scmp.ne.s32.totalorder %s72, %s73
      %p85 = scmp.eq.s32.totalorder %s21, 1
      %p86 = por %p84, %p85
      %p88 = scmp.ne.s32.totalorder %s73, %s87
      %p89 = scmp.eq.s32.totalorder %s21, 0
      %p90 = por %p88, %p89
      %s91 = ssub.s32 %s15, %s22
      %p92 = scmp.eq.s32.totalorder %s91, 0
      %s94 = sadd.s32 %s93, 1
      %s95 = scalar_select %p92, %s93, %s94
      %p98 = pneg %p92
      %p99 = scmp.eq.s32.totalorder %s15, 1
      %p100 = por %p98, %p99
      %p101 = scmp.ne.s32.totalorder %s93, %s96
      %p102 = scmp.eq.s32.totalorder %s15, 0
      %p103 = por %p101, %p102
      %p104 = scmp.ne.s32.totalorder %s93, %s96
      %p105 = scmp.eq.s32.totalorder %s20, 1
      %p106 = por %p104, %p105
      %p107 = scmp.ne.s32.totalorder %s96, %s97
      %p108 = scmp.eq.s32.totalorder %s20, 0
      %p109 = por %p107, %p108
      %p110 = scmp.ne.s32.totalorder %s96, %s97
      %p111 = scmp.eq.s32.totalorder %s21, 1
      %p112 = por %p110, %p111
      %p114 = scmp.ne.s32.totalorder %s97, %s113
      %p115 = scmp.eq.s32.totalorder %s21, 0
      %p116 = por %p114, %p115
      %p117 = scmp.le.s32.totalorder 1, %s15
      %p118 = scmp.lt.s32.totalorder %s15, 3
      %p119 = pnand %p117, %p118
      %p120 = pneg %p119
      // Predicated region
      $region9: #{tpu_custom_call.1} parent=5 // pred_check
        _
      $region10: #{tpu_custom_call.1} parent=5 // pred_check_branch
        %122 = sbr.rel (%p119) target = $region12
      $region11: #{tpu_custom_call.1} parent=5 // pred_region
        %s123 = ssub.s32 %s15, 1
        // Predicated region
        $region13: #{tpu_custom_call.1} parent=11 // pred_check
          %p124 = pneg %p62
        $region14: #{tpu_custom_call.1} parent=11 // pred_check_branch
          %126 = sbr.rel (%p124) target = $region16
        $region15: #{tpu_custom_call.1} parent=11 // pred_region
          _
        $region16: #{tpu_custom_call.1} parent=11 // pred_fallthru
          _
        // Predicated region
        $region17: #{tpu_custom_call.1} parent=11 // pred_check
          %p127 = pneg %p83
        $region18: #{tpu_custom_call.1} parent=11 // pred_check_branch
          %129 = sbr.rel (%p127) target = $region20
        $region19: #{tpu_custom_call.1} parent=11 // pred_region
          _
        $region20: #{tpu_custom_call.1} parent=11 // pred_fallthru
          _
      $region12: #{tpu_custom_call.1} parent=5 // pred_fallthru
        _
      %p130 = scmp.lt.s32.totalorder %s15, 2
      // Predicated region
      $region21: #{tpu_custom_call.1} parent=5 // pred_check
        %p131 = pneg %p130
      $region22: #{tpu_custom_call.1} parent=5 // pred_check_branch
        %133 = sbr.rel (%p131) target = $region24
      $region23: #{tpu_custom_call.1} parent=5 // pred_region
        // Predicated region
        $region25: #{tpu_custom_call.1} parent=23 // pred_check
          %p134 = pneg %p35
        $region26: #{tpu_custom_call.1} parent=23 // pred_check_branch
          %136 = sbr.rel (%p134) target = $region28
        $region27: #{tpu_custom_call.1} parent=23 // pred_region
          %s137 = sand.u32 %s25, 1
          %s138 = scalar_lea.sflag [#allocation3], %s137
          %s139 = sand.u32 %s25, 1
          %s140 = smul.addr %s139, 32
          %s141 = scalar_lea.vmem [#allocation2], %s140
          %s143 = ssub.s32 512, 512
          %144 = vsyncadd %s138, %s143
          %s145 = smul.addr %s15, 4
          %s146 = smul.addr %s145, 128
          %s147 = scalar_lea.hbm %s0, %s146
          %s148 = sshll.u32 %s141, 4
          %s149 = int_to_ptr.vmem [resolvable:$true] %s148
          %154 = dma.hbm_to_vmem [thread:$0]  %s147, 512, %s149, %s138, 128, 128, 8
        $region28: #{tpu_custom_call.1} parent=23 // pred_fallthru
          _
      $region24: #{tpu_custom_call.1} parent=5 // pred_fallthru
        _
      %p155 = scmp.le.s32.totalorder 1, %s15
      %p156 = scmp.lt.s32.totalorder %s15, 3
      %p157 = pnand %p155, %p156
      %p158 = pneg %p157
      // Predicated region
      $region29: #{tpu_custom_call.1} parent=5 // pred_check
        _
      $region30: #{tpu_custom_call.1} parent=5 // pred_check_branch
        %160 = sbr.rel (%p157) target = $region32
      $region31: #{tpu_custom_call.1} parent=5 // pred_region
        %s161 = ssub.s32 %s15, 1
        %s162 = sand.u32 %s28, 1
        %s163 = scalar_lea.sflag [#allocation3], %s162
        %s164 = sand.u32 %s28, 1
        %s165 = smul.addr %s164, 32
        %s166 = scalar_lea.vmem [#allocation2], %s165
        // Predicated region
        $region33: #{tpu_custom_call.1} parent=31 // pred_check
          %p167 = pneg %p41
        $region34: #{tpu_custom_call.1} parent=31 // pred_check_branch
          %169 = sbr.rel (%p167) target = $region36
        $region35: #{tpu_custom_call.1} parent=31 // pred_region
          %170 = dma.done %s163, 512
        $region36: #{tpu_custom_call.1} parent=31 // pred_fallthru
          _
        %s171 = sand.u32 %s28, 1
        %s172 = scalar_lea.sflag [#allocation3], %s171
        %s173 = sand.u32 %s28, 1
        %s174 = smul.addr %s173, 32
        %s175 = scalar_lea.vmem [#allocation2], %s174
        %p176 = pneg %p41
        %p177 = pneg %p38
        %p178 = pneg %p62
        %p179 = pneg %p59
        %p180 = pneg %p83
        %p181 = pneg %p80
        %p182 = pneg %p109
        %p183 = pneg %p106
        %s184 = sand.u32 %s96, 1
        %s185 = scalar_lea.sflag [#allocation4], %s184
        %s186 = sand.u32 %s96, 1
        %s187 = smul.addr %s186, 32
        %s188 = scalar_lea.vmem [#allocation5], %s187
        %v189 = vld [vmem:[%s166] sm:$0xff]
        %v190 = vld [vmem:[%s166 + $0x8] sm:$0xff]
        %v191 = vld [vmem:[%s166 + $0x10] sm:$0xff]
        %v192 = vld [vmem:[%s166 + $0x18] sm:$0xff]
        %193 = vadd.xlane.f32.xlu0 %v189
        %v194 = vpop.xlane.xlu0 %193
        %195 = vadd.xlane.f32.xlu0 %v190
        %v196 = vpop.xlane.xlu0 %195
        %197 = vadd.xlane.f32.xlu0 %v191
        %v198 = vpop.xlane.xlu0 %197
        %199 = vadd.xlane.f32.xlu0 %v192
        %v200 = vpop.xlane.xlu0 %199
        %201 = vmax.xlane.f32.xlu0 %v189
        %v202 = vpop.xlane.xlu0 %201
        %203 = vmax.xlane.f32.xlu0 %v190
        %v204 = vpop.xlane.xlu0 %203
        %205 = vmax.xlane.f32.xlu0 %v191
        %v206 = vpop.xlane.xlu0 %205
        %207 = vmax.xlane.f32.xlu0 %v192
        %v208 = vpop.xlane.xlu0 %207
        %v209 = vmul.f32 %v194, 0.0078125
        %v210 = vmul.f32 %v196, 0.0078125
        %v211 = vmul.f32 %v198, 0.0078125
        %v212 = vmul.f32 %v200, 0.0078125
        %v213 = vld [vmem:[%s1] sm:$0x3]
        %v214 = vld [vmem:[%s2] sm:$0xff]
        %v215 = vld [vmem:[%s2 + $0x8] sm:$0xff]
        %v216 = vld [vmem:[%s2 + $0x10] sm:$0xff]
        %v217 = vld [vmem:[%s2 + $0x18] sm:$0xff]
        %vm218 = vcmask 261120
        %v220 = vsel %vm218, %v213, 0
        %222 = vmatprep.subr.mxu0 0.0
        %223 = vmatpush1.msra.mxu0 0.0
        %224 = vmatprep.subr.mxu0 0.0
        %225 = vmatpush1.msra.mxu0 0.0
        %226 = vmatprep.subr.mxu0 0.0
        %227 = vmatpush1.msra.mxu0 0.0
        %228 = vmatprep.subr.mxu0 0.0
        %229 = vmatpush1.msra.mxu0 0.0
        %230 = vmatprep.subr.mxu0 0.0
        %231 = vmatpush1.msra.mxu0 0.0
        %232 = vmatprep.subr.mxu0 0.0
        %233 = vmatpush1.msra.mxu0 0.0
        %234 = vmatprep.subr.mxu0 0.0
        %235 = vmatpush1.msra.mxu0 0.0
        %236 = vmatprep.subr.mxu0 0.0
        %237 = vmatpush1.msra.mxu0 0.0
        %238 = vmatprep.subr.mxu0 0.0
        %239 = vmatpush1.msra.mxu0 0.0
        %240 = vmatprep.subr.mxu0 0.0
        %241 = vmatpush1.msra.mxu0 0.0
        %242 = vmatprep.subr.mxu0 0.0
        %243 = vmatpush1.msra.mxu0 0.0
        %244 = vmatprep.subr.mxu0 0.0
        %245 = vmatpush1.msra.mxu0 0.0
        %246 = vmatprep.subr.mxu0 0.0
        %247 = vmatpush1.msra.mxu0 %v212
        %248 = vmatprep.subr.mxu0 0.0
        %249 = vmatpush1.msra.mxu0 %v211
        %250 = vmatprep.subr.mxu0 0.0
        %251 = vmatpush1.msra.mxu0 %v210
        %252 = vmatprep.subr.mxu0 0.0
        %253 = vmatpush1.msra.mxu0 %v209
        %254 = vmatprep.subr.mxu0 0.0
        %255 = vmatpush2.msra.mxu0 0.0
        %256 = vmatprep.subr.mxu0 0.0
        %257 = vmatpush2.msra.mxu0 0.0
        %258 = vmatprep.subr.mxu0 0.0
        %259 = vmatpush2.msra.mxu0 0.0
        %260 = vmatprep.subr.mxu0 0.0
        %261 = vmatpush2.msra.mxu0 0.0
        %262 = vmatprep.subr.mxu0 0.0
        %263 = vmatpush2.msra.mxu0 0.0
        %264 = vmatprep.subr.mxu0 0.0
        %265 = vmatpush2.msra.mxu0 0.0
        %266 = vmatprep.subr.mxu0 0.0
        %267 = vmatpush2.msra.mxu0 0.0
        %268 = vmatprep.subr.mxu0 0.0
        %269 = vmatpush2.msra.mxu0 0.0
        %270 = vmatprep.subr.mxu0 0.0
        %271 = vmatpush2.msra.mxu0 0.0
        %272 = vmatprep.subr.mxu0 0.0
        %273 = vmatpush2.msra.mxu0 0.0
        %274 = vmatprep.subr.mxu0 0.0
        %275 = vmatpush2.msra.mxu0 0.0
        %276 = vmatprep.subr.mxu0 0.0
        %277 = vmatpush2.msra.mxu0 0.0
        %278 = vmatprep.subr.mxu0 0.0
        %279 = vmatpush2.msra.mxu0 0.0
        %280 = vmatprep.subr.mxu0 0.0
        %281 = vmatpush2.msra.mxu0 0.0
        %282 = vmatprep.subr.mxu0 0.0
        %283 = vmatpush2.msra.mxu0 0.0
        %284 = vmatprep.subr.mxu0 0.0
        %285 = vmatpush2.msra.mxu0 0.0
        %286 = vmatprep.mubr.f32.mxu0 0.0
        %287 = vmatmul.mubr.f32.gmra.mxu0 %v220
        %v288 = vpop.f32.mrf.mxu0
        %v289 = vadd.f32 0.0, %v288
        %v290 = vpop.f32.mrf.mxu0
        %291 = vdwg.mxu0
        %v292 = vmax.f32 %v289, 0.0
        %293 = vmatprep.subr.mxu0 0.0
        %294 = vmatpush1.msra.mxu0 0.0
        %295 = vmatprep.subr.mxu0 0.0
        %296 = vmatpush1.msra.mxu0 0.0
        %297 = vmatprep.subr.mxu0 0.0
        %298 = vmatpush1.msra.mxu0 0.0
        %299 = vmatprep.subr.mxu0 0.0
        %300 = vmatpush1.msra.mxu0 0.0
        %301 = vmatprep.subr.mxu0 0.0
        %302 = vmatpush1.msra.mxu0 0.0
        %303 = vmatprep.subr.mxu0 0.0
        %304 = vmatpush1.msra.mxu0 0.0
        %305 = vmatprep.subr.mxu0 0.0
        %306 = vmatpush1.msra.mxu0 0.0
        %307 = vmatprep.subr.mxu0 0.0
        %308 = vmatpush1.msra.mxu0 0.0
        %309 = vmatprep.subr.mxu0 0.0
        %310 = vmatpush1.msra.mxu0 0.0
        %311 = vmatprep.subr.mxu0 0.0
        %312 = vmatpush1.msra.mxu0 0.0
        %313 = vmatprep.subr.mxu0 0.0
        %314 = vmatpush1.msra.mxu0 0.0
        %315 = vmatprep.subr.mxu0 0.0
        %316 = vmatpush1.msra.mxu0 0.0
        %317 = vmatprep.subr.mxu0 0.0
        %318 = vmatpush1.msra.mxu0 %v208
        %319 = vmatprep.subr.mxu0 0.0
        %320 = vmatpush1.msra.mxu0 %v206
        %321 = vmatprep.subr.mxu0 0.0
        %322 = vmatpush1.msra.mxu0 %v204
        %323 = vmatprep.subr.mxu0 0.0
        %324 = vmatpush1.msra.mxu0 %v202
        %325 = vmatprep.subr.mxu0 0.0
        %326 = vmatpush2.msra.mxu0 0.0
        %327 = vmatprep.subr.mxu0 0.0
        %328 = vmatpush2.msra.mxu0 0.0
        %329 = vmatprep.subr.mxu0 0.0
        %330 = vmatpush2.msra.mxu0 0.0
        %331 = vmatprep.subr.mxu0 0.0
        %332 = vmatpush2.msra.mxu0 0.0
        %333 = vmatprep.subr.mxu0 0.0
        %334 = vmatpush2.msra.mxu0 0.0
        %335 = vmatprep.subr.mxu0 0.0
        %336 = vmatpush2.msra.mxu0 0.0
        %337 = vmatprep.subr.mxu0 0.0
        %338 = vmatpush2.msra.mxu0 0.0
        %339 = vmatprep.subr.mxu0 0.0
        %340 = vmatpush2.msra.mxu0 0.0
        %341 = vmatprep.subr.mxu0 0.0
        %342 = vmatpush2.msra.mxu0 0.0
        %343 = vmatprep.subr.mxu0 0.0
        %344 = vmatpush2.msra.mxu0 0.0
        %345 = vmatprep.subr.mxu0 0.0
        %346 = vmatpush2.msra.mxu0 0.0
        %347 = vmatprep.subr.mxu0 0.0
        %348 = vmatpush2.msra.mxu0 0.0
        %349 = vmatprep.subr.mxu0 0.0
        %350 = vmatpush2.msra.mxu0 0.0
        %351 = vmatprep.subr.mxu0 0.0
        %352 = vmatpush2.msra.mxu0 0.0
        %353 = vmatprep.subr.mxu0 0.0
        %354 = vmatpush2.msra.mxu0 0.0
        %355 = vmatprep.subr.mxu0 0.0
        %356 = vmatpush2.msra.mxu0 0.0
        %357 = vmatprep.mubr.f32.mxu0 0.0
        %358 = vmatmul.mubr.f32.gmra.mxu0 %v220
        %v359 = vpop.f32.mrf.mxu0
        %v360 = vadd.f32 0.0, %v359
        %v361 = vpop.f32.mrf.mxu0
        %362 = vdwg.mxu0
        %v363 = vmax.f32 %v360, 0.0
        %v364 = vadd.f32 %v292, %v363
        %vm365 = vcmask 15360
        %v367 = vsel %vm365, %v214, 0
        %v370 = vsel %vm365, %v215, 0
        %v373 = vsel %vm365, %v216, 0
        %v376 = vsel %vm365, %v217, 0
        %vm378 = vcmask 1041408
        %v380 = vsel %vm378, %v364, 0
        %382 = vmatprep.subr.mxu0 0.0
        %383 = vmatpush1.msra.mxu0 0.0
        %384 = vmatprep.subr.mxu0 0.0
        %385 = vmatpush1.msra.mxu0 0.0
        %386 = vmatprep.subr.mxu0 0.0
        %387 = vmatpush1.msra.mxu0 0.0
        %388 = vmatprep.subr.mxu0 0.0
        %389 = vmatpush1.msra.mxu0 0.0
        %390 = vmatprep.subr.mxu0 0.0
        %391 = vmatpush1.msra.mxu0 0.0
        %392 = vmatprep.subr.mxu0 0.0
        %393 = vmatpush1.msra.mxu0 0.0
        %394 = vmatprep.subr.mxu0 0.0
        %395 = vmatpush1.msra.mxu0 0.0
        %396 = vmatprep.subr.mxu0 0.0
        %397 = vmatpush1.msra.mxu0 0.0
        %398 = vmatprep.subr.mxu0 0.0
        %399 = vmatpush1.msra.mxu0 0.0
        %400 = vmatprep.subr.mxu0 0.0
        %401 = vmatpush1.msra.mxu0 0.0
        %402 = vmatprep.subr.mxu0 0.0
        %403 = vmatpush1.msra.mxu0 0.0
        %404 = vmatprep.subr.mxu0 0.0
        %405 = vmatpush1.msra.mxu0 0.0
        %406 = vmatprep.subr.mxu0 0.0
        %407 = vmatpush1.msra.mxu0 0.0
        %408 = vmatprep.subr.mxu0 0.0
        %409 = vmatpush1.msra.mxu0 0.0
        %410 = vmatprep.subr.mxu0 0.0
        %411 = vmatpush1.msra.mxu0 0.0
        %412 = vmatprep.subr.mxu0 0.0
        %413 = vmatpush1.msra.mxu0 %v380
        %414 = vmatprep.subr.mxu0 0.0
        %415 = vmatpush2.msra.mxu0 0.0
        %416 = vmatprep.subr.mxu0 0.0
        %417 = vmatpush2.msra.mxu0 0.0
        %418 = vmatprep.subr.mxu0 0.0
        %419 = vmatpush2.msra.mxu0 0.0
        %420 = vmatprep.subr.mxu0 0.0
        %421 = vmatpush2.msra.mxu0 0.0
        %422 = vmatprep.subr.mxu0 0.0
        %423 = vmatpush2.msra.mxu0 0.0
        %424 = vmatprep.subr.mxu0 0.0
        %425 = vmatpush2.msra.mxu0 0.0
        %426 = vmatprep.subr.mxu0 0.0
        %427 = vmatpush2.msra.mxu0 0.0
        %428 = vmatprep.subr.mxu0 0.0
        %429 = vmatpush2.msra.mxu0 0.0
        %430 = vmatprep.subr.mxu0 0.0
        %431 = vmatpush2.msra.mxu0 0.0
        %432 = vmatprep.subr.mxu0 0.0
        %433 = vmatpush2.msra.mxu0 0.0
        %434 = vmatprep.subr.mxu0 0.0
        %435 = vmatpush2.msra.mxu0 0.0
        %436 = vmatprep.subr.mxu0 0.0
        %437 = vmatpush2.msra.mxu0 0.0
        %438 = vmatprep.subr.mxu0 0.0
        %439 = vmatpush2.msra.mxu0 0.0
        %440 = vmatprep.subr.mxu0 0.0
        %441 = vmatpush2.msra.mxu0 0.0
        %442 = vmatprep.subr.mxu0 0.0
        %443 = vmatpush2.msra.mxu0 0.0
        %444 = vmatprep.subr.mxu0 0.0
        %445 = vmatpush2.msra.mxu0 0.0
        %446 = vmatprep.mubr.f32.mxu0 0.0
        %447 = vmatmul.mubr.f32.gmra.mxu0 %v367
        %v448 = vpop.f32.mrf.mxu0
        %v449 = vadd.f32 0.0, %v448
        %v450 = vpop.f32.mrf.mxu0
        %451 = vmatprep.mubr.f32.mxu0 0.0
        %452 = vmatmul.mubr.f32.gmra.mxu0 %v370
        %v453 = vpop.f32.mrf.mxu0
        %v454 = vadd.f32 0.0, %v453
        %v455 = vpop.f32.mrf.mxu0
        %456 = vmatprep.mubr.f32.mxu0 0.0
        %457 = vmatmul.mubr.f32.gmra.mxu0 %v373
        %v458 = vpop.f32.mrf.mxu0
        %v459 = vadd.f32 0.0, %v458
        %v460 = vpop.f32.mrf.mxu0
        %461 = vmatprep.mubr.f32.mxu0 0.0
        %462 = vmatmul.mubr.f32.gmra.mxu0 %v376
        %v463 = vpop.f32.mrf.mxu0
        %v464 = vadd.f32 0.0, %v463
        %v465 = vpop.f32.mrf.mxu0
        %466 = vdwg.mxu0
        %v467 = vxor.u32 %v449, 2147483648
        %v468 = vxor.u32 %v454, 2147483648
        %v469 = vxor.u32 %v459, 2147483648
        %v470 = vxor.u32 %v464, 2147483648
        %v471 = vmul.f32 %v467, 1.442695
        %v472 = vpow.pop %v471
        %v473 = vmul.f32 %v468, 1.442695
        %v474 = vpow.pop %v473
        %v475 = vmul.f32 %v469, 1.442695
        %v476 = vpow.pop %v475
        %v477 = vmul.f32 %v470, 1.442695
        %v478 = vpow.pop %v477
        %v479 = vadd.f32 %v472, 1.0
        %v480 = vadd.f32 %v474, 1.0
        %v481 = vadd.f32 %v476, 1.0
        %v482 = vadd.f32 %v478, 1.0
        %v483 = vrcp.pop %v479
        %v484 = vmul.f32 1.0, %v483
        %v485 = vrcp.pop %v480
        %v486 = vmul.f32 1.0, %v485
        %v487 = vrcp.pop %v481
        %v488 = vmul.f32 1.0, %v487
        %v489 = vrcp.pop %v482
        %v490 = vmul.f32 1.0, %v489
        %492 = vset.pattern.permute.xlu0 0
        %493 = vperm.xlu0 %492, %v484
        %v494 = vpop.permute.xlu0 %493
        %497 = vset.pattern.permute.xlu0 0
        %498 = vperm.xlu0 %497, %v486
        %v499 = vpop.permute.xlu0 %498
        %502 = vset.pattern.permute.xlu0 0
        %503 = vperm.xlu0 %502, %v488
        %v504 = vpop.permute.xlu0 %503
        %507 = vset.pattern.permute.xlu0 0
        %508 = vperm.xlu0 %507, %v490
        %v509 = vpop.permute.xlu0 %508
        %v511 = vmul.f32 %v189, %v494
        %v512 = vmul.f32 %v190, %v499
        %v513 = vmul.f32 %v191, %v504
        %v514 = vmul.f32 %v192, %v509
        %515 = vst [vmem:[%s188] sm:$0xff] %v511
        %516 = vst [vmem:[%s188 + $0x8] sm:$0xff] %v512
        %517 = vst [vmem:[%s188 + $0x10] sm:$0xff] %v513
        %518 = vst [vmem:[%s188 + $0x18] sm:$0xff] %v514
        %s519 = sand.u32 %s96, 1
        %s520 = scalar_lea.sflag [#allocation4], %s519
        %s521 = sand.u32 %s96, 1
        %s522 = smul.addr %s521, 32
        %s523 = scalar_lea.vmem [#allocation5], %s522
        // Predicated region
        $region37: #{tpu_custom_call.1} parent=31 // pred_check
          %p524 = pneg %p106
        $region38: #{tpu_custom_call.1} parent=31 // pred_check_branch
          %526 = sbr.rel (%p524) target = $region40
        $region39: #{tpu_custom_call.1} parent=31 // pred_region
          %s528 = ssub.s32 512, 512
          %529 = vsyncadd %s520, %s528
          %s530 = smul.addr %s20, 4
          %s531 = smul.addr %s530, 128
          %s532 = scalar_lea.hbm %s3, %s531
          %s533 = sshll.u32 %s523, 4
          %s534 = int_to_ptr.vmem [resolvable:$true] %s533
          %539 = dma.vmem_to_hbm [thread:$0]  %s534, 512, %s532, %s520, 128, 128, 8
        $region40: #{tpu_custom_call.1} parent=31 // pred_fallthru
          _
      $region32: #{tpu_custom_call.1} parent=5 // pred_fallthru
        _
      %p540 = scmp.le.s32.totalorder 2, %s15
      // Predicated region
      $region41: #{tpu_custom_call.1} parent=5 // pred_check
        %p541 = pneg %p540
      $region42: #{tpu_custom_call.1} parent=5 // pred_check_branch
        %543 = sbr.rel (%p541) target = $region44
      $region43: #{tpu_custom_call.1} parent=5 // pred_region
        %s544 = ssub.s32 %s15, 2
        // Predicated region
        $region45: #{tpu_custom_call.1} parent=43 // pred_check
          %p545 = pneg %p112
        $region46: #{tpu_custom_call.1} parent=43 // pred_check_branch
          %547 = sbr.rel (%p545) target = $region48
        $region47: #{tpu_custom_call.1} parent=43 // pred_region
          %s548 = sand.u32 %s97, 1
          %s549 = scalar_lea.sflag [#allocation4], %s548
          %s550 = sand.u32 %s97, 1
          %s551 = smul.addr %s550, 32
          %s552 = scalar_lea.vmem [#allocation5], %s551
          %553 = dma.done %s549, 512
        $region48: #{tpu_custom_call.1} parent=43 // pred_fallthru
          _
      $region44: #{tpu_custom_call.1} parent=5 // pred_fallthru
        _
    $region6: #{tpu_custom_call.1} parent=1 // loop_footer
      %s19 = sadd.s32 1, %s15
    $region7: #{tpu_custom_call.1} parent=1 // loop_footer_branch
      %14 = sbr.rel target = $region3
    $region8: #{tpu_custom_call.1} parent=1 // loop_exit
      _
    %554 = vsyncpa [#allocation3], 1
    %s555 = scalar_lea.sflag [#allocation3], 1
    %556 = vsyncpa %s555, 1
    %557 = vsyncpa [#allocation4], 1
    %s558 = scalar_lea.sflag [#allocation4], 1
    %559 = vsyncpa %s558, 1

</llo_original>
